<compile_context>
chip_gen: v5e
topology: v5e:2x2
jax: 0.10.0
libtpu: 0.0.40
codegen_flags: <defaults>
</compile_context>

<pallas_src>
import functools

import jax
import jax.numpy as jnp
from jax.experimental import pallas as pl
from jax.experimental.pallas import tpu as pltpu


# ----------------------------------------------------------------------------
# Kernel 1: fused global average pool + 1x1 conv + ReLU + (eval) BatchNorm.
# Grid = (batch, spatial_tiles); spatial is the reduction axis (last, "arbitrary").
# ----------------------------------------------------------------------------
def _pool_conv_relu_bn_kernel(x_ref, w_ref, scale_ref, shift_ref, vals_ref, acc_ref,
                              *, inv_hw):
    # x_ref:     (1, Cin, TS)  spatial tile of one image (lanes = spatial)
    # w_ref:     (Cout, Cin)   1x1 conv weight
    # scale_ref: (Cout, 1)     gamma / sqrt(var + eps)
    # shift_ref: (Cout, 1)     beta - mean * scale
    # vals_ref:  (1, Cout, 1)  fused per-(batch, out-channel) result
    # acc_ref:   (Cin, 1)      running spatial sum (f32 scratch)
    s = pl.program_id(1)

    @pl.when(s == 0)
    def _init():
        acc_ref[...] = jnp.zeros_like(acc_ref)

    x = x_ref[0].astype(jnp.float32)                          # (Cin, TS)
    acc_ref[...] += jnp.sum(x, axis=-1, keepdims=True)        # (Cin, 1)

    @pl.when(s == pl.num_programs(1) - 1)
    def _finish():
        pooled = acc_ref[...] * inv_hw                        # (Cin, 1) global mean
        w = w_ref[...]                                        # (Cout, Cin)
        cin = w.shape[1]
        if cin <= 32:
            # Tiny contraction: unrolled VPU broadcast multiply-adds (no MXU).
            y = w[:, 0:1] * pooled[0:1, :]                    # (Cout, 1)
            for ci in range(1, cin):
                y = y + w[:, ci:ci + 1] * pooled[ci:ci + 1, :]
        else:
            # Large channel counts: one MXU matvec per image is appropriate.
            y = jnp.dot(w, pooled, preferred_element_type=jnp.float32)
        y = jnp.maximum(y, 0.0)                               # ReLU (before BN)
        y = y * scale_ref[...] + shift_ref[...]               # eval-mode BatchNorm
        vals_ref[0] = y.astype(vals_ref.dtype)


# ----------------------------------------------------------------------------
# Kernel 2: lane-dense constant broadcast over the spatial extent
# (== bilinear upsampling from a 1x1 source).
# ----------------------------------------------------------------------------
def _broadcast_kernel(vals_ref, o_ref):
    # vals_ref: (1, Cout, 1) ; o_ref: (1, Cout, TS)
    v = vals_ref[0]                                           # (Cout, 1)
    o_ref[0] = jnp.broadcast_to(v, o_ref.shape[1:]).astype(o_ref.dtype)


def _choose_spatial_tile(hw, c_max, budget_bytes=8 * 1024 * 1024):
    """Largest lane tile keeping double-buffered f32 blocks within a VMEM budget."""
    if hw * c_max * 4 * 2 <= budget_bytes:
        return hw                        # whole image per grid step fits comfortably
    if hw % 128 != 0:
        # TODO(synk): mask/pad ragged spatial extents; fall back to full-extent block.
        return hw
    max_ts = max(128, (budget_bytes // (c_max * 4 * 2)) // 128 * 128)
    for cand in range(max_ts, 127, -128):
        if hw % cand == 0:
            return cand
    return 128


# ----------------------------------------------------------------------------
# Wrapper
# ----------------------------------------------------------------------------
def avg_pool_block(x_nchw, conv_weight, bn_gamma, bn_beta, bn_mean, bn_var, *,
                   eps=1e-5):
    """AdaptiveAvgPool2d(1) -> Conv2d(1x1, no bias) -> ReLU -> BatchNorm2d (eval)
    -> bilinear upsample back to the input spatial size (NCHW in / NCHW out)."""
    N, Cin, H, W = x_nchw.shape
    Cout = conv_weight.shape[0]
    HW = H * W

    # Free contiguous reshapes only (no transposes, no pads).
    x_flat = x_nchw.reshape(N, Cin, HW)
    w2d = conv_weight.reshape(Cout, Cin).astype(jnp.float32)

    scale = bn_gamma.astype(jnp.float32) / jnp.sqrt(bn_var.astype(jnp.float32) + eps)
    shift = bn_beta.astype(jnp.float32) - bn_mean.astype(jnp.float32) * scale
    scale2d = scale.reshape(Cout, 1)
    shift2d = shift.reshape(Cout, 1)

    TS = _choose_spatial_tile(HW, max(Cin, Cout))
    S = HW // TS
    inv_hw = 1.0 / float(HW)

    # ---- kernel 1: fused global-avg-pool + 1x1 conv + ReLU + BN -----------------
    vals = pl.pallas_call(
        functools.partial(_pool_conv_relu_bn_kernel, inv_hw=inv_hw),
        out_shape=jax.ShapeDtypeStruct((N, Cout, 1), jnp.float32),
        grid_spec=pltpu.PrefetchScalarGridSpec(
            num_scalar_prefetch=0,
            grid=(N, S),                                      # reduction axis last
            in_specs=[
                pl.BlockSpec((1, Cin, TS), lambda n, s: (n, 0, s)),
                pl.BlockSpec((Cout, Cin), lambda n, s: (0, 0)),
                pl.BlockSpec((Cout, 1), lambda n, s: (0, 0)),
                pl.BlockSpec((Cout, 1), lambda n, s: (0, 0)),
            ],
            out_specs=pl.BlockSpec((1, Cout, 1), lambda n, s: (n, 0, 0)),
            scratch_shapes=[pltpu.VMEM((Cin, 1), jnp.float32)],
        ),
        compiler_params=pltpu.CompilerParams(
            dimension_semantics=("parallel", "arbitrary")),
    )(x_flat, w2d, scale2d, shift2d)

    # ---- kernel 2: lane-dense broadcast over the spatial extent -----------------
    out_flat = pl.pallas_call(
        _broadcast_kernel,
        out_shape=jax.ShapeDtypeStruct((N, Cout, HW), x_nchw.dtype),
        grid_spec=pltpu.PrefetchScalarGridSpec(
            num_scalar_prefetch=0,
            grid=(N, S),
            in_specs=[pl.BlockSpec((1, Cout, 1), lambda n, s: (n, 0, 0))],
            out_specs=pl.BlockSpec((1, Cout, TS), lambda n, s: (n, 0, s)),
        ),
        compiler_params=pltpu.CompilerParams(
            dimension_semantics=("parallel", "parallel")),
    )(vals)

    return out_flat.reshape(N, Cout, H, W)


# ----------------------------------------------------------------------------
# Pure-JAX reference (same eval-mode BN semantics) for a correctness check.
# ----------------------------------------------------------------------------
def _reference(x, conv_weight, gamma, beta, mean, var, eps=1e-5):
    N, C, H, W = x.shape
    Cout = conv_weight.shape[0]
    pooled = jnp.mean(x.astype(jnp.float32), axis=(2, 3))            # (N, C)
    w2 = conv_weight.reshape(Cout, C).astype(jnp.float32)
    y = jnp.sum(pooled[:, None, :] * w2[None, :, :], axis=-1)        # (N, Cout)
    y = jnp.maximum(y, 0.0)
    scale = gamma / jnp.sqrt(var + eps)
    shift = beta - mean * scale
    y = y * scale[None, :] + shift[None, :]
    # Bilinear upsampling of a 1x1 map (align_corners=False) is a constant broadcast.
    return jnp.broadcast_to(y[:, :, None, None], (N, Cout, H, W)).astype(x.dtype)


if __name__ == "__main__":
    # AvgPoolBlock(in_channels=4, out_channels=8) on input (2, 4, 16, 16)
    N, Cin, H, W = 2, 4, 16, 16
    Cout = 8

    key = jax.random.PRNGKey(0)
    k_x, k_w, k_g, k_b, k_m, k_v = jax.random.split(key, 6)

    x = jax.random.normal(k_x, (N, Cin, H, W), jnp.float32)
    conv_weight = 0.1 * jax.random.normal(k_w, (Cout, Cin, 1, 1), jnp.float32)
    bn_gamma = 1.0 + 0.1 * jax.random.normal(k_g, (Cout,), jnp.float32)
    bn_beta = 0.1 * jax.random.normal(k_b, (Cout,), jnp.float32)
    bn_mean = 0.1 * jax.random.normal(k_m, (Cout,), jnp.float32)
    bn_var = 1.0 + 0.1 * jnp.abs(jax.random.normal(k_v, (Cout,), jnp.float32))

    fn = jax.jit(avg_pool_block)
    out = jax.block_until_ready(fn(x, conv_weight, bn_gamma, bn_beta, bn_mean, bn_var))
    ref = jax.block_until_ready(
        _reference(x, conv_weight, bn_gamma, bn_beta, bn_mean, bn_var))

    assert out.shape == (N, Cout, H, W), out.shape
    max_err = float(jnp.max(jnp.abs(out - ref)))
    assert jnp.allclose(out, ref, atol=1e-4, rtol=1e-4), max_err
    print("KERNEL_OK")
</pallas_src>

<mosaic_0001>
module attributes {stable_mosaic.version = 11 : i64} {
  func.func @_broadcast_kernel(%arg0: i32, %arg1: i32, %arg2: memref<1x8x1xf32, #tpu.memory_space<vmem>>, %arg3: memref<1x8x256xf32, #tpu.memory_space<vmem>>) attributes {dimension_semantics = [#tpu.dimension_semantics<parallel>, #tpu.dimension_semantics<parallel>], iteration_bounds = array<i64: 2, 1>, scalar_prefetch = 0 : i64, scratch_operands = 0 : i64, tpu.core_type = #tpu.core_type<tc>, window_params = [{transform_indices = @transform_0, window_bounds = array<i64: 1, 8, 1>}, {transform_indices = @transform_1, window_bounds = array<i64: 1, 8, 256>}]} {
    %c0 = arith.constant 0 : index
    %c0_0 = arith.constant 0 : index
    %c0_1 = arith.constant 0 : index
    %0 = vector.load %arg2[%c0, %c0_0, %c0_1] : memref<1x8x1xf32, #tpu.memory_space<vmem>>, vector<1x8x1xf32>
    %1 = vector.shape_cast %0 : vector<1x8x1xf32> to vector<8x1xf32>
    %2 = vector.shape_cast %1 : vector<8x1xf32> to vector<8x1xf32>
    %3 = vector.broadcast %2 : vector<8x1xf32> to vector<8x256xf32>
    %c0_2 = arith.constant 0 : index
    %c0_3 = arith.constant 0 : index
    %c0_4 = arith.constant 0 : index
    %4 = vector.load %arg3[%c0_2, %c0_3, %c0_4] : memref<1x8x256xf32, #tpu.memory_space<vmem>>, vector<1x8x256xf32>
    %5 = vector.shape_cast %4 : vector<1x8x256xf32> to vector<8x256xf32>
    %6 = vector.shape_cast %3 : vector<8x256xf32> to vector<1x8x256xf32>
    tpu.vector_store %arg3[%c0_2, %c0_3, %c0_4], %6 {strides = array<i32>} : memref<1x8x256xf32, #tpu.memory_space<vmem>>, vector<1x8x256xf32>,
    return
  }
  func.func @transform_0(%arg0: i32, %arg1: i32) -> (i32, i32, i32) {
    %c0_i32 = arith.constant 0 : i32
    %c0_i32_0 = arith.constant 0 : i32
    %c0_i32_1 = arith.constant 0 : i32
    return %arg0, %c0_i32, %c0_i32_0 : i32, i32, i32
  }
  func.func @transform_1(%arg0: i32, %arg1: i32) -> (i32, i32, i32) {
    %c0_i32 = arith.constant 0 : i32
    %c0_i32_0 = arith.constant 0 : i32
    return %arg0, %c0_i32, %arg1 : i32, i32, i32
  }
}

module attributes {stable_mosaic.version = 11 : i64} {
  func.func @_pool_conv_relu_bn_kernel(%arg0: i32, %arg1: i32, %arg2: memref<1x4x256xf32, #tpu.memory_space<vmem>>, %arg3: memref<8x4xf32, #tpu.memory_space<vmem>>, %arg4: memref<8x1xf32, #tpu.memory_space<vmem>>, %arg5: memref<8x1xf32, #tpu.memory_space<vmem>>, %arg6: memref<1x8x1xf32, #tpu.memory_space<vmem>>, %arg7: memref<4x1xf32, #tpu.memory_space<vmem>>) attributes {dimension_semantics = [#tpu.dimension_semantics<parallel>, #tpu.dimension_semantics<arbitrary>], iteration_bounds = array<i64: 2, 1>, scalar_prefetch = 0 : i64, scratch_operands = 1 : i64, tpu.core_type = #tpu.core_type<tc>, window_params = [{transform_indices = @transform_0, window_bounds = array<i64: 1, 4, 256>}, {pipeline_mode = #tpu.pipeline_mode<synchronous>, transform_indices = @transform_1, window_bounds = array<i64: 8, 4>}, {pipeline_mode = #tpu.pipeline_mode<synchronous>, transform_indices = @transform_2, window_bounds = array<i64: 8, 1>}, {pipeline_mode = #tpu.pipeline_mode<synchronous>, transform_indices = @transform_3, window_bounds = array<i64: 8, 1>}, {transform_indices = @transform_4, window_bounds = array<i64: 1, 8, 1>}]} {
    %c0_i32 = arith.constant 0 : i32
    %0 = arith.cmpi eq, %arg1, %c0_i32 : i32
    %1 = arith.extui %0 : i1 to i32
    %c0_i32_0 = arith.constant 0 : i32
    %2 = arith.cmpi ne, %1, %c0_i32_0 : i32
    scf.if %2 {
      %cst_9 = arith.constant 0.000000e+00 : f32
      %13 = vector.broadcast %cst_9 : f32 to vector<4x1xf32>
      %c0_10 = arith.constant 0 : index
      %c0_11 = arith.constant 0 : index
      %14 = vector.load %arg7[%c0_10, %c0_11] : memref<4x1xf32, #tpu.memory_space<vmem>>, vector<4x1xf32>
      tpu.vector_store %arg7[%c0_10, %c0_11], %13 {strides = array<i32>} : memref<4x1xf32, #tpu.memory_space<vmem>>, vector<4x1xf32>,
    } else {
    }
    %c0 = arith.constant 0 : index
    %c0_1 = arith.constant 0 : index
    %c0_2 = arith.constant 0 : index
    %3 = vector.load %arg2[%c0, %c0_1, %c0_2] : memref<1x4x256xf32, #tpu.memory_space<vmem>>, vector<1x4x256xf32>
    %4 = vector.shape_cast %3 : vector<1x4x256xf32> to vector<4x256xf32>
    %c0_3 = arith.constant 0 : index
    %c0_4 = arith.constant 0 : index
    %5 = vector.load %arg7[%c0_3, %c0_4] : memref<4x1xf32, #tpu.memory_space<vmem>>, vector<4x1xf32>
    %cst = arith.constant dense<0.000000e+00> : vector<4xf32>
    %6 = vector.multi_reduction <add>, %4, %cst [1] : vector<4x256xf32> to vector<4xf32>
    %7 = vector.shape_cast %6 : vector<4xf32> to vector<4x1xf32>
    %8 = arith.addf %5, %7 : vector<4x1xf32>
    %c0_5 = arith.constant 0 : index
    %c0_6 = arith.constant 0 : index
    %9 = vector.load %arg7[%c0_5, %c0_6] : memref<4x1xf32, #tpu.memory_space<vmem>>, vector<4x1xf32>
    tpu.vector_store %arg7[%c0_5, %c0_6], %8 {strides = array<i32>} : memref<4x1xf32, #tpu.memory_space<vmem>>, vector<4x1xf32>,
    %c0_i32_7 = arith.constant 0 : i32
    %10 = arith.cmpi eq, %arg1, %c0_i32_7 : i32
    %11 = arith.extui %10 : i1 to i32
    %c0_i32_8 = arith.constant 0 : i32
    %12 = arith.cmpi ne, %11, %c0_i32_8 : i32
    scf.if %12 {
      %c0_9 = arith.constant 0 : index
      %c0_10 = arith.constant 0 : index
      %13 = vector.load %arg7[%c0_9, %c0_10] : memref<4x1xf32, #tpu.memory_space<vmem>>, vector<4x1xf32>
      %cst_11 = arith.constant 3.906250e-03 : f32
      %14 = vector.broadcast %cst_11 : f32 to vector<4x1xf32>
      %15 = arith.mulf %13, %14 : vector<4x1xf32>
      %c0_12 = arith.constant 0 : index
      %c0_13 = arith.constant 0 : index
      %16 = vector.load %arg3[%c0_12, %c0_13] : memref<8x4xf32, #tpu.memory_space<vmem>>, vector<8x4xf32>
      %17 = vector.extract_strided_slice %16 {offsets = [0, 0], sizes = [8, 1], strides = [1, 1]} : vector<8x4xf32> to vector<8x1xf32>
      %18 = vector.extract_strided_slice %15 {offsets = [0, 0], sizes = [1, 1], strides = [1, 1]} : vector<4x1xf32> to vector<1x1xf32>
      %19 = vector.broadcast %18 : vector<1x1xf32> to vector<8x1xf32>
      %20 = arith.mulf %17, %19 : vector<8x1xf32>
      %21 = vector.extract_strided_slice %16 {offsets = [0, 1], sizes = [8, 1], strides = [1, 1]} : vector<8x4xf32> to vector<8x1xf32>
      %22 = vector.extract_strided_slice %15 {offsets = [1, 0], sizes = [1, 1], strides = [1, 1]} : vector<4x1xf32> to vector<1x1xf32>
      %23 = vector.broadcast %22 : vector<1x1xf32> to vector<8x1xf32>
      %24 = arith.mulf %21, %23 : vector<8x1xf32>
      %25 = arith.addf %20, %24 : vector<8x1xf32>
      %26 = vector.extract_strided_slice %16 {offsets = [0, 2], sizes = [8, 1], strides = [1, 1]} : vector<8x4xf32> to vector<8x1xf32>
      %27 = vector.extract_strided_slice %15 {offsets = [2, 0], sizes = [1, 1], strides = [1, 1]} : vector<4x1xf32> to vector<1x1xf32>
      %28 = vector.broadcast %27 : vector<1x1xf32> to vector<8x1xf32>
      %29 = arith.mulf %26, %28 : vector<8x1xf32>
      %30 = arith.addf %25, %29 : vector<8x1xf32>
      %31 = vector.extract_strided_slice %16 {offsets = [0, 3], sizes = [8, 1], strides = [1, 1]} : vector<8x4xf32> to vector<8x1xf32>
      %32 = vector.extract_strided_slice %15 {offsets = [3, 0], sizes = [1, 1], strides = [1, 1]} : vector<4x1xf32> to vector<1x1xf32>
      %33 = vector.broadcast %32 : vector<1x1xf32> to vector<8x1xf32>
      %34 = arith.mulf %31, %33 : vector<8x1xf32>
      %35 = arith.addf %30, %34 : vector<8x1xf32>
      %cst_14 = arith.constant 0.000000e+00 : f32
      %36 = vector.broadcast %cst_14 : f32 to vector<8x1xf32>
      %37 = arith.maximumf %35, %36 : vector<8x1xf32>
      %c0_15 = arith.constant 0 : index
      %c0_16 = arith.constant 0 : index
      %38 = vector.load %arg4[%c0_15, %c0_16] : memref<8x1xf32, #tpu.memory_space<vmem>>, vector<8x1xf32>
      %39 = arith.mulf %37, %38 : vector<8x1xf32>
      %c0_17 = arith.constant 0 : index
      %c0_18 = arith.constant 0 : index
      %40 = vector.load %arg5[%c0_17, %c0_18] : memref<8x1xf32, #tpu.memory_space<vmem>>, vector<8x1xf32>
      %41 = arith.addf %39, %40 : vector<8x1xf32>
      %c0_19 = arith.constant 0 : index
      %c0_20 = arith.constant 0 : index
      %c0_21 = arith.constant 0 : index
      %42 = vector.load %arg6[%c0_19, %c0_20, %c0_21] : memref<1x8x1xf32, #tpu.memory_space<vmem>>, vector<1x8x1xf32>
      %43 = vector.shape_cast %42 : vector<1x8x1xf32> to vector<8x1xf32>
      %44 = vector.shape_cast %41 : vector<8x1xf32> to vector<1x8x1xf32>
      tpu.vector_store %arg6[%c0_19, %c0_20, %c0_21], %44 {strides = array<i32>} : memref<1x8x1xf32, #tpu.memory_space<vmem>>, vector<1x8x1xf32>,
    } else {
    }
    return
  }
  func.func @transform_0(%arg0: i32, %arg1: i32) -> (i32, i32, i32) {
    %c0_i32 = arith.constant 0 : i32
    %c0_i32_0 = arith.constant 0 : i32
    return %arg0, %c0_i32, %arg1 : i32, i32, i32
  }
  func.func @transform_1(%arg0: i32, %arg1: i32) -> (i32, i32) {
    %c0_i32 = arith.constant 0 : i32
    %c0_i32_0 = arith.constant 0 : i32
    %c0_i32_1 = arith.constant 0 : i32
    return %c0_i32, %c0_i32_0 : i32, i32
  }
  func.func @transform_2(%arg0: i32, %arg1: i32) -> (i32, i32) {
    %c0_i32 = arith.constant 0 : i32
    %c0_i32_0 = arith.constant 0 : i32
    %c0_i32_1 = arith.constant 0 : i32
    return %c0_i32, %c0_i32_0 : i32, i32
  }
  func.func @transform_3(%arg0: i32, %arg1: i32) -> (i32, i32) {
    %c0_i32 = arith.constant 0 : i32
    %c0_i32_0 = arith.constant 0 : i32
    %c0_i32_1 = arith.constant 0 : i32
    return %c0_i32, %c0_i32_0 : i32, i32
  }
  func.func @transform_4(%arg0: i32, %arg1: i32) -> (i32, i32, i32) {
    %c0_i32 = arith.constant 0 : i32
    %c0_i32_0 = arith.constant 0 : i32
    %c0_i32_1 = arith.constant 0 : i32
    return %arg0, %c0_i32, %c0_i32_0 : i32, i32, i32
  }
}

</mosaic_0001>

<llo_original>
// kernel: avg_pool_block.2
$region0: #{avg_pool_block.2}
  #allocation0 [shape = 'u32[]', space=smem, size = 0x4, offset = 0x4, fixed_abs, tag = 'smem constant byte address 0x4 - core index']
  #allocation1 [shape = 'u32[72,128]{1,0:T(1,128)}', space=vmem, size = 0x9000, scoped, tag = 'internal scratch']
  #allocation2 [shape = 'f32[4,1]{1,0:T(4,128)}', space=vmem, size = 0x800, scoped, tag = 'scratch operand']
  %s0 = inlined_call_operand.vmem [shape: f32[2,4,256], index: 0, kind: input, shape index: {}]
  %s1 = inlined_call_operand.vmem [shape: f32[8,4], index: 1, kind: input, shape index: {}]
  %s2 = inlined_call_operand.vmem [shape: f32[8,1], index: 2, kind: input, shape index: {}]
  %s3 = inlined_call_operand.vmem [shape: f32[8,1], index: 3, kind: input, shape index: {}]
  %s4 = inlined_call_operand.vmem [shape: f32[2,8,1], index: 4, kind: output, shape index: {}]
  %s5 = sld [smem:[#allocation0]]
  $region57: #{avg_pool_block.2} parent=0
    _
  %s7 = ssub.s32 1, %s5
  %s8 = scalar_select 0, %s7, %s5
  loop: start=0, step=1, limit=4
  $region2: #{avg_pool_block.2} parent=0 // loop_pre_header
    _
  $region3: #{avg_pool_block.2} parent=0 // loop_header
    %s10 = sphi 0, %s14
    %p11 = scmp.ge.s32.totalorder %s10, 4
    %s17 = sphi 0, %s29
    %s18 = sphi 0, %s25
    %s19 = sphi 0, %s17
    %s20 = sphi 0, %s18
    %s21 = sphi 0, %s19
    %s22 = sphi 0, %s20
    %s34 = sphi 0, %s36
    %s37 = sphi 0, %s34
    %s38 = sphi 0, %s37
    %s54 = sphi 0, %s38
    %s58 = sphi 0, %s58
    %s60 = sphi 0, %s58
    %s61 = sphi 0, %s60
    %s75 = sphi 0, %s61
    %s79 = sphi 0, %s79
    %s81 = sphi 0, %s79
    %s82 = sphi 0, %s81
    %s96 = sphi 0, %s82
    %s100 = sphi 0, %s100
    %s102 = sphi 0, %s100
    %s103 = sphi 0, %s102
    %s117 = sphi 0, %s103
    %s123 = sphi 0, %s125
    %s126 = sphi 0, %s123
    %s127 = sphi 0, %s126
    %s143 = sphi 0, %s127
  $region4: #{avg_pool_block.2} parent=0 // loop_header_branch
    %13 = sbr.rel (%p11) target = $region8
  $region5: #{avg_pool_block.2} parent=0 // loop_body
    %s15 = ssub.s32 %s10, 1
    %s16 = ssub.s32 %s10, 2
    %s23 = sadd.s32 1, %s18
    %p24 = scmp.ge.s32.totalorder %s23, 1
    %s25 = scalar_select %p24, 0, %s23
    %s26 = sadd.s32 1, %s17
    %s27 = scalar_select %p24, %s26, %s17
    %p28 = scmp.ge.s32.totalorder %s27, 2
    %s29 = scalar_select %p28, 0, %s27
    %s30 = ssub.s32 %s17, %s29
    %s31 = ssub.s32 %s18, %s25
    %s32 = sor.u32 %s30, %s31
    %p33 = scmp.eq.s32.totalorder %s32, 0
    %s35 = sadd.s32 %s34, 1
    %s36 = scalar_select %p33, %s34, %s35
    %p39 = pneg %p33
    %p40 = scmp.eq.s32.totalorder %s10, 1
    %p41 = por %p39, %p40
    %p42 = scmp.ne.s32.totalorder %s34, %s37
    %p43 = scmp.eq.s32.totalorder %s10, 0
    %p44 = por %p42, %p43
    %p45 = scmp.ne.s32.totalorder %s34, %s37
    %p46 = scmp.eq.s32.totalorder %s15, 1
    %p47 = por %p45, %p46
    %p48 = scmp.ne.s32.totalorder %s37, %s38
    %p49 = scmp.eq.s32.totalorder %s15, 0
    %p50 = por %p48, %p49
    %p51 = scmp.ne.s32.totalorder %s37, %s38
    %p52 = scmp.eq.s32.totalorder %s16, 1
    %p53 = por %p51, %p52
    %p55 = scmp.ne.s32.totalorder %s38, %s54
    %p56 = scmp.eq.s32.totalorder %s16, 0
    %p57 = por %p55, %p56
    %s59 = sadd.s32 %s58, 1
    %p62 = scmp.eq.s32.totalorder %s10, 1
    %p63 = scmp.ne.s32.totalorder %s58, %s60
    %p64 = scmp.eq.s32.totalorder %s10, 0
    %p65 = por %p63, %p64
    %p66 = scmp.ne.s32.totalorder %s58, %s60
    %p67 = scmp.eq.s32.totalorder %s15, 1
    %p68 = por %p66, %p67
    %p69 = scmp.ne.s32.totalorder %s60, %s61
    %p70 = scmp.eq.s32.totalorder %s15, 0
    %p71 = por %p69, %p70
    %p72 = scmp.ne.s32.totalorder %s60, %s61
    %p73 = scmp.eq.s32.totalorder %s16, 1
    %p74 = por %p72, %p73
    %p76 = scmp.ne.s32.totalorder %s61, %s75
    %p77 = scmp.eq.s32.totalorder %s16, 0
    %p78 = por %p76, %p77
    %s80 = sadd.s32 %s79, 1
    %p83 = scmp.eq.s32.totalorder %s10, 1
    %p84 = scmp.ne.s32.totalorder %s79, %s81
    %p85 = scmp.eq.s32.totalorder %s10, 0
    %p86 = por %p84, %p85
    %p87 = scmp.ne.s32.totalorder %s79, %s81
    %p88 = scmp.eq.s32.totalorder %s15, 1
    %p89 = por %p87, %p88
    %p90 = scmp.ne.s32.totalorder %s81, %s82
    %p91 = scmp.eq.s32.totalorder %s15, 0
    %p92 = por %p90, %p91
    %p93 = scmp.ne.s32.totalorder %s81, %s82
    %p94 = scmp.eq.s32.totalorder %s16, 1
    %p95 = por %p93, %p94
    %p97 = scmp.ne.s32.totalorder %s82, %s96
    %p98 = scmp.eq.s32.totalorder %s16, 0
    %p99 = por %p97, %p98
    %s101 = sadd.s32 %s100, 1
    %p104 = scmp.eq.s32.totalorder %s10, 1
    %p105 = scmp.ne.s32.totalorder %s100, %s102
    %p106 = scmp.eq.s32.totalorder %s10, 0
    %p107 = por %p105, %p106
    %p108 = scmp.ne.s32.totalorder %s100, %s102
    %p109 = scmp.eq.s32.totalorder %s15, 1
    %p110 = por %p108, %p109
    %p111 = scmp.ne.s32.totalorder %s102, %s103
    %p112 = scmp.eq.s32.totalorder %s15, 0
    %p113 = por %p111, %p112
    %p114 = scmp.ne.s32.totalorder %s102, %s103
    %p115 = scmp.eq.s32.totalorder %s16, 1
    %p116 = por %p114, %p115
    %p118 = scmp.ne.s32.totalorder %s103, %s117
    %p119 = scmp.eq.s32.totalorder %s16, 0
    %p120 = por %p118, %p119
    %s121 = ssub.s32 %s17, %s29
    %p122 = scmp.eq.s32.totalorder %s121, 0
    %s124 = sadd.s32 %s123, 1
    %s125 = scalar_select %p122, %s123, %s124
    %p128 = pneg %p122
    %p129 = scmp.eq.s32.totalorder %s10, 1
    %p130 = por %p128, %p129
    %p131 = scmp.ne.s32.totalorder %s123, %s126
    %p132 = scmp.eq.s32.totalorder %s10, 0
    %p133 = por %p131, %p132
    %p134 = scmp.ne.s32.totalorder %s123, %s126
    %p135 = scmp.eq.s32.totalorder %s15, 1
    %p136 = por %p134, %p135
    %p137 = scmp.ne.s32.totalorder %s126, %s127
    %p138 = scmp.eq.s32.totalorder %s15, 0
    %p139 = por %p137, %p138
    %p140 = scmp.ne.s32.totalorder %s126, %s127
    %p141 = scmp.eq.s32.totalorder %s16, 1
    %p142 = por %p140, %p141
    %p144 = scmp.ne.s32.totalorder %s127, %s143
    %p145 = scmp.eq.s32.totalorder %s16, 0
    %p146 = por %p144, %p145
    %p147 = scmp.le.s32.totalorder 1, %s10
    %p148 = scmp.lt.s32.totalorder %s10, 3
    %p149 = pnand %p147, %p148
    %p150 = pneg %p149
    // Predicated region
    $region9: #{avg_pool_block.2} parent=5 // pred_check
      _
    $region10: #{avg_pool_block.2} parent=5 // pred_check_branch
      %152 = sbr.rel (%p149) target = $region12
    $region11: #{avg_pool_block.2} parent=5 // pred_region
      %s153 = ssub.s32 %s10, 1
      // Predicated region
      $region13: #{avg_pool_block.2} parent=11 // pred_check
        %p154 = pneg %p71
      $region14: #{avg_pool_block.2} parent=11 // pred_check_branch
        %156 = sbr.rel (%p154) target = $region16
      $region15: #{avg_pool_block.2} parent=11 // pred_region
        _
      $region16: #{avg_pool_block.2} parent=11 // pred_fallthru
        _
      // Predicated region
      $region17: #{avg_pool_block.2} parent=11 // pred_check
        %p157 = pneg %p92
      $region18: #{avg_pool_block.2} parent=11 // pred_check_branch
        %159 = sbr.rel (%p157) target = $region20
      $region19: #{avg_pool_block.2} parent=11 // pred_region
        _
      $region20: #{avg_pool_block.2} parent=11 // pred_fallthru
        _
      // Predicated region
      $region21: #{avg_pool_block.2} parent=11 // pred_check
        %p160 = pneg %p113
      $region22: #{avg_pool_block.2} parent=11 // pred_check_branch
        %162 = sbr.rel (%p160) target = $region24
      $region23: #{avg_pool_block.2} parent=11 // pred_region
        _
      $region24: #{avg_pool_block.2} parent=11 // pred_fallthru
        _
    $region12: #{avg_pool_block.2} parent=5 // pred_fallthru
      _
    %p163 = scmp.lt.s32.totalorder %s10, 2
    // Predicated region
    $region25: #{avg_pool_block.2} parent=5 // pred_check
      %p164 = pneg %p163
    $region26: #{avg_pool_block.2} parent=5 // pred_check_branch
      %166 = sbr.rel (%p164) target = $region28
    $region27: #{avg_pool_block.2} parent=5 // pred_region
      // Predicated region
      $region29: #{avg_pool_block.2} parent=27 // pred_check
        %p167 = pneg %p44
      $region30: #{avg_pool_block.2} parent=27 // pred_check_branch
        %169 = sbr.rel (%p167) target = $region32
      $region31: #{avg_pool_block.2} parent=27 // pred_region
        %s170 = smul.u32 2, %s18
        %p171 = scmp.lt.s32.totalorder %s17, 1
        %s172 = scalar_select %p171, %s17, 1
        %p173 = scmp.lt.s32.totalorder %s170, 1
        %s174 = scalar_select %p173, %s170, 1
        %s175 = smul.addr %s172, 2
        %s176 = sadd.s32 %s174, %s175
        %s177 = smul.addr %s176, 4
        %s178 = scalar_lea.vmem %s0, %s177
        %s179 = smul.u32 2, %s18
      $region32: #{avg_pool_block.2} parent=27 // pred_fallthru
        _
    $region28: #{avg_pool_block.2} parent=5 // pred_fallthru
      _
    %p180 = scmp.le.s32.totalorder 1, %s10
    %p181 = scmp.lt.s32.totalorder %s10, 3
    %p182 = pnand %p180, %p181
    %p183 = pneg %p182
    // Predicated region
    $region33: #{avg_pool_block.2} parent=5 // pred_check
      _
    $region34: #{avg_pool_block.2} parent=5 // pred_check_branch
      %185 = sbr.rel (%p182) target = $region36
    $region35: #{avg_pool_block.2} parent=5 // pred_region
      %s186 = ssub.s32 %s10, 1
      %s187 = smul.u32 2, %s20
      %p188 = scmp.lt.s32.totalorder %s19, 1
      %s189 = scalar_select %p188, %s19, 1
      %p190 = scmp.lt.s32.totalorder %s187, 1
      %s191 = scalar_select %p190, %s187, 1
      %s192 = smul.addr %s189, 2
      %s193 = sadd.s32 %s191, %s192
      %s194 = smul.addr %s193, 4
      %s195 = scalar_lea.vmem %s0, %s194
      %p196 = pneg %p50
      %p197 = pneg %p47
      %p198 = pneg %p71
      %p199 = pneg %p68
      %p200 = pneg %p92
      %p201 = pneg %p89
      %p202 = pneg %p113
      %p203 = pneg %p110
      %p204 = pneg %p139
      %p205 = pneg %p136
      %p206 = scmp.lt.s32.totalorder %s19, 1
      %s207 = scalar_select %p206, %s19, 1
      %s208 = smul.addr %s207, 8
      %s209 = scalar_lea.vmem %s4, %s208
      %s210 = smul.u32 2, %s20
      %p211 = scmp.lt.s32.totalorder %s19, 1
      %s212 = scalar_select %p211, %s19, 1
      %p213 = scmp.lt.s32.totalorder %s210, 1
      %s214 = scalar_select %p213, %s210, 1
      %s215 = smul.addr %s212, 2
      %s216 = sadd.s32 %s214, %s215
      %s217 = smul.addr %s216, 4
      %s218 = scalar_lea.vmem %s0, %s217
      %s219 = smul.u32 2, %s20
      %p220 = scmp.lt.s32.totalorder %s19, 1
      %s221 = scalar_select %p220, %s19, 1
      %s222 = smul.addr %s221, 8
      %s223 = scalar_lea.vmem %s4, %s222
      %p224 = scmp.eq.s32.totalorder %s20, 0
      // Predicated region
      $region37: #{avg_pool_block.2} parent=35 // pred_check
        %p225 = pneg %p224
      $region38: #{avg_pool_block.2} parent=35 // pred_check_branch
        %227 = sbr.rel (%p225) target = $region40
      $region39: #{avg_pool_block.2} parent=35 // pred_region
        %vm228 = vcmask 3072
        %229 = vst.msk [vmem:[#allocation2] sm:$0xf] %vm228, 0.0
      $region40: #{avg_pool_block.2} parent=35 // pred_fallthru
        _
      %v230 = vld [vmem:[%s218] sm:$0xff]
      %v231 = vld [vmem:[#allocation2] sm:$0xf]
      %233 = vst [vmem:[#allocation1] ss:$2 sm:$0xff] %v230
      %v234 = vld.sshfl [vmem:[#allocation1] sm:$0xff pattern:$0x75316420]
      %v235 = vld.sshfl [vmem:[#allocation1 + $0x8] sm:$0xff pattern:$0x75316420]
      %vm238 = vcmask 1043456
      %v239 = vsel %vm238, %v234, 0.0
      %v240 = vsel %vm238, %v235, 0.0
      %v241 = vadd.f32 %v239, %v240
      %242 = vadd.xlane.f32.xlu0 %v241
      %v243 = vpop.xlane.xlu0 %242
      %v244 = vadd.f32 %v231, %v243
      %vm245 = vcmask 3072
      %246 = vst.msk [vmem:[#allocation2] sm:$0xf] %vm245, %v244
      // Predicated region
      $region41: #{avg_pool_block.2} parent=35 // pred_check
        %p247 = pneg %p224
      $region42: #{avg_pool_block.2} parent=35 // pred_check_branch
        %249 = sbr.rel (%p247) target = $region44
      $region43: #{avg_pool_block.2} parent=35 // pred_region
        %v250 = vld [vmem:[#allocation2] sm:$0xf]
        %v251 = vmul.f32 %v250, 0.00390625
        %v252 = vld [vmem:[%s1] sm:$0xff]
        %v253 = vperm.slane %v251, 0
        %v254 = vmul.f32 %v252, %v253
        %v255 = vperm.slane %v251, 1
        %257 = vrot.lane.b32.xlu0 %v255, 1
        %v258 = vpop.permute.xlu0 %257
        %v260 = vmul.f32 %v252, %v258
        %262 = vrot.lane.b32.xlu0 %v260, 127
        %v263 = vpop.permute.xlu0 %262
        %v265 = vadd.f32 %v254, %v263
        %v266 = vperm.slane %v251, 2
        %268 = vrot.lane.b32.xlu0 %v266, 2
        %v269 = vpop.permute.xlu0 %268
        %v271 = vmul.f32 %v252, %v269
        %273 = vrot.lane.b32.xlu0 %v271, 126
        %v274 = vpop.permute.xlu0 %273
        %v276 = vadd.f32 %v265, %v274
        %v277 = vperm.slane %v251, 3
        %279 = vrot.lane.b32.xlu0 %v277, 3
        %v280 = vpop.permute.xlu0 %279
        %v282 = vmul.f32 %v252, %v280
        %284 = vrot.lane.b32.xlu0 %v282, 125
        %v285 = vpop.permute.xlu0 %284
        %v287 = vadd.f32 %v276, %v285
        %v288 = vmax.f32 %v287, 0.0
        %v289 = vld [vmem:[%s2] sm:$0xff]
        %v290 = vmul.f32 %v288, %v289
        %v291 = vld [vmem:[%s3] sm:$0xff]
        %v292 = vadd.f32 %v290, %v291
        %vm293 = vcmask 7168
        %294 = vst.msk [vmem:[%s223] sm:$0xff] %vm293, %v292
      $region44: #{avg_pool_block.2} parent=35 // pred_fallthru
        _
      %p295 = scmp.lt.s32.totalorder %s19, 1
      %s296 = scalar_select %p295, %s19, 1
      %s297 = smul.addr %s296, 8
      %s298 = scalar_lea.vmem %s4, %s297
      // Predicated region
      $region45: #{avg_pool_block.2} parent=35 // pred_check
        %p299 = pneg %p136
      $region46: #{avg_pool_block.2} parent=35 // pred_check_branch
        %301 = sbr.rel (%p299) target = $region48
      $region47: #{avg_pool_block.2} parent=35 // pred_region
        _
      $region48: #{avg_pool_block.2} parent=35 // pred_fallthru
        _
    $region36: #{avg_pool_block.2} parent=5 // pred_fallthru
      _
    %p302 = scmp.le.s32.totalorder 2, %s10
    // Predicated region
    $region49: #{avg_pool_block.2} parent=5 // pred_check
      %p303 = pneg %p302
    $region50: #{avg_pool_block.2} parent=5 // pred_check_branch
      %305 = sbr.rel (%p303) target = $region52
    $region51: #{avg_pool_block.2} parent=5 // pred_region
      %s306 = ssub.s32 %s10, 2
      // Predicated region
      $region53: #{avg_pool_block.2} parent=51 // pred_check
        %p307 = pneg %p142
      $region54: #{avg_pool_block.2} parent=51 // pred_check_branch
        %309 = sbr.rel (%p307) target = $region56
      $region55: #{avg_pool_block.2} parent=51 // pred_region
        %p310 = scmp.lt.s32.totalorder %s21, 1
        %s311 = scalar_select %p310, %s21, 1
        %s312 = smul.addr %s311, 8
        %s313 = scalar_lea.vmem %s4, %s312
      $region56: #{avg_pool_block.2} parent=51 // pred_fallthru
        _
    $region52: #{avg_pool_block.2} parent=5 // pred_fallthru
      _
  $region6: #{avg_pool_block.2} parent=0 // loop_footer
    %s14 = sadd.s32 1, %s10
  $region7: #{avg_pool_block.2} parent=0 // loop_footer_branch
    %9 = sbr.rel target = $region3
  $region8: #{avg_pool_block.2} parent=0 // loop_exit
    _

// kernel: avg_pool_block.3
$region0: #{avg_pool_block.3}
  #allocation0 [shape = 'u32[]', space=smem, size = 0x4, offset = 0x4, fixed_abs, tag = 'smem constant byte address 0x4 - core index']
  #allocation1 [shape = 'u32[72,128]{1,0:T(1,128)}', space=vmem, size = 0x9000, scoped, tag = 'internal scratch']
  %s0 = inlined_call_operand.vmem [shape: f32[2,8,1], index: 0, kind: input, shape index: {}]
  %s1 = inlined_call_operand.vmem [shape: f32[2,8,256], index: 1, kind: output, shape index: {}]
  %s2 = sld [smem:[#allocation0]]
  $region37: #{avg_pool_block.3} parent=0
    _
  %s4 = ssub.s32 1, %s2
  %s5 = scalar_select 0, %s4, %s2
  loop: start=0, step=1, limit=4
  $region2: #{avg_pool_block.3} parent=0 // loop_pre_header
    _
  $region3: #{avg_pool_block.3} parent=0 // loop_header
    %s7 = sphi 0, %s11
    %p8 = scmp.ge.s32.totalorder %s7, 4
    %s14 = sphi 0, %s26
    %s15 = sphi 0, %s22
    %s16 = sphi 0, %s14
    %s17 = sphi 0, %s15
    %s18 = sphi 0, %s16
    %s19 = sphi 0, %s17
    %s29 = sphi 0, %s31
    %s32 = sphi 0, %s29
    %s33 = sphi 0, %s32
    %s49 = sphi 0, %s33
    %s57 = sphi 0, %s59
    %s60 = sphi 0, %s57
    %s61 = sphi 0, %s60
    %s77 = sphi 0, %s61
  $region4: #{avg_pool_block.3} parent=0 // loop_header_branch
    %10 = sbr.rel (%p8) target = $region8
  $region5: #{avg_pool_block.3} parent=0 // loop_body
    %s12 = ssub.s32 %s7, 1
    %s13 = ssub.s32 %s7, 2
    %s20 = sadd.s32 1, %s15
    %p21 = scmp.ge.s32.totalorder %s20, 1
    %s22 = scalar_select %p21, 0, %s20
    %s23 = sadd.s32 1, %s14
    %s24 = scalar_select %p21, %s23, %s14
    %p25 = scmp.ge.s32.totalorder %s24, 2
    %s26 = scalar_select %p25, 0, %s24
    %s27 = ssub.s32 %s14, %s26
    %p28 = scmp.eq.s32.totalorder %s27, 0
    %s30 = sadd.s32 %s29, 1
    %s31 = scalar_select %p28, %s29, %s30
    %p34 = pneg %p28
    %p35 = scmp.eq.s32.totalorder %s7, 1
    %p36 = por %p34, %p35
    %p37 = scmp.ne.s32.totalorder %s29, %s32
    %p38 = scmp.eq.s32.totalorder %s7, 0
    %p39 = por %p37, %p38
    %p40 = scmp.ne.s32.totalorder %s29, %s32
    %p41 = scmp.eq.s32.totalorder %s12, 1
    %p42 = por %p40, %p41
    %p43 = scmp.ne.s32.totalorder %s32, %s33
    %p44 = scmp.eq.s32.totalorder %s12, 0
    %p45 = por %p43, %p44
    %p46 = scmp.ne.s32.totalorder %s32, %s33
    %p47 = scmp.eq.s32.totalorder %s13, 1
    %p48 = por %p46, %p47
    %p50 = scmp.ne.s32.totalorder %s33, %s49
    %p51 = scmp.eq.s32.totalorder %s13, 0
    %p52 = por %p50, %p51
    %s53 = ssub.s32 %s14, %s26
    %s54 = ssub.s32 %s15, %s22
    %s55 = sor.u32 %s53, %s54
    %p56 = scmp.eq.s32.totalorder %s55, 0
    %s58 = sadd.s32 %s57, 1
    %s59 = scalar_select %p56, %s57, %s58
    %p62 = pneg %p56
    %p63 = scmp.eq.s32.totalorder %s7, 1
    %p64 = por %p62, %p63
    %p65 = scmp.ne.s32.totalorder %s57, %s60
    %p66 = scmp.eq.s32.totalorder %s7, 0
    %p67 = por %p65, %p66
    %p68 = scmp.ne.s32.totalorder %s57, %s60
    %p69 = scmp.eq.s32.totalorder %s12, 1
    %p70 = por %p68, %p69
    %p71 = scmp.ne.s32.totalorder %s60, %s61
    %p72 = scmp.eq.s32.totalorder %s12, 0
    %p73 = por %p71, %p72
    %p74 = scmp.ne.s32.totalorder %s60, %s61
    %p75 = scmp.eq.s32.totalorder %s13, 1
    %p76 = por %p74, %p75
    %p78 = scmp.ne.s32.totalorder %s61, %s77
    %p79 = scmp.eq.s32.totalorder %s13, 0
    %p80 = por %p78, %p79
    %p81 = scmp.le.s32.totalorder 1, %s7
    %p82 = scmp.lt.s32.totalorder %s7, 3
    %p83 = pnand %p81, %p82
    %p84 = pneg %p83
    // Predicated region
    $region9: #{avg_pool_block.3} parent=5 // pred_check
      _
    $region10: #{avg_pool_block.3} parent=5 // pred_check_branch
      %86 = sbr.rel (%p83) target = $region12
    $region11: #{avg_pool_block.3} parent=5 // pred_region
      %s87 = ssub.s32 %s7, 1
    $region12: #{avg_pool_block.3} parent=5 // pred_fallthru
      _
    %p88 = scmp.lt.s32.totalorder %s7, 2
    // Predicated region
    $region13: #{avg_pool_block.3} parent=5 // pred_check
      %p89 = pneg %p88
    $region14: #{avg_pool_block.3} parent=5 // pred_check_branch
      %91 = sbr.rel (%p89) target = $region16
    $region15: #{avg_pool_block.3} parent=5 // pred_region
      // Predicated region
      $region17: #{avg_pool_block.3} parent=15 // pred_check
        %p92 = pneg %p39
      $region18: #{avg_pool_block.3} parent=15 // pred_check_branch
        %94 = sbr.rel (%p92) target = $region20
      $region19: #{avg_pool_block.3} parent=15 // pred_region
        %p95 = scmp.lt.s32.totalorder %s14, 1
        %s96 = scalar_select %p95, %s14, 1
        %s97 = smul.addr %s96, 8
        %s98 = scalar_lea.vmem %s0, %s97
      $region20: #{avg_pool_block.3} parent=15 // pred_fallthru
        _
    $region16: #{avg_pool_block.3} parent=5 // pred_fallthru
      _
    %p99 = scmp.le.s32.totalorder 1, %s7
    %p100 = scmp.lt.s32.totalorder %s7, 3
    %p101 = pnand %p99, %p100
    %p102 = pneg %p101
    // Predicated region
    $region21: #{avg_pool_block.3} parent=5 // pred_check
      _
    $region22: #{avg_pool_block.3} parent=5 // pred_check_branch
      %104 = sbr.rel (%p101) target = $region24
    $region23: #{avg_pool_block.3} parent=5 // pred_region
      %s105 = ssub.s32 %s7, 1
      %p106 = scmp.lt.s32.totalorder %s16, 1
      %s107 = scalar_select %p106, %s16, 1
      %s108 = smul.addr %s107, 8
      %s109 = scalar_lea.vmem %s0, %s108
      %p110 = pneg %p45
      %p111 = pneg %p42
      %p112 = pneg %p73
      %p113 = pneg %p70
      %s114 = smul.u32 2, %s17
      %p115 = scmp.lt.s32.totalorder %s16, 1
      %s116 = scalar_select %p115, %s16, 1
      %p117 = scmp.lt.s32.totalorder %s114, 1
      %s118 = scalar_select %p117, %s114, 1
      %s119 = smul.addr %s116, 2
      %s120 = sadd.s32 %s118, %s119
      %s121 = smul.addr %s120, 8
      %s122 = scalar_lea.vmem %s1, %s121
      %p123 = scmp.lt.s32.totalorder %s16, 1
      %s124 = scalar_select %p123, %s16, 1
      %s125 = smul.addr %s124, 8
      %s126 = scalar_lea.vmem %s0, %s125
      %s127 = smul.u32 2, %s17
      %p128 = scmp.lt.s32.totalorder %s16, 1
      %s129 = scalar_select %p128, %s16, 1
      %p130 = scmp.lt.s32.totalorder %s127, 1
      %s131 = scalar_select %p130, %s127, 1
      %s132 = smul.addr %s129, 2
      %s133 = sadd.s32 %s131, %s132
      %s134 = smul.addr %s133, 8
      %s135 = scalar_lea.vmem %s1, %s134
      %s136 = smul.u32 2, %s17
      %v137 = vld [vmem:[%s126] sm:$0xff]
      %139 = vset.pattern.permute.xlu0 0
      %140 = vperm.xlu0 %139, %v137
      %v141 = vpop.permute.xlu0 %140
      %143 = vst [vmem:[%s135] sm:$0xff] %v141
      %144 = vst [vmem:[%s135 + $0x8] sm:$0xff] %v141
      %s145 = smul.u32 2, %s17
      %p146 = scmp.lt.s32.totalorder %s16, 1
      %s147 = scalar_select %p146, %s16, 1
      %p148 = scmp.lt.s32.totalorder %s145, 1
      %s149 = scalar_select %p148, %s145, 1
      %s150 = smul.addr %s147, 2
      %s151 = sadd.s32 %s149, %s150
      %s152 = smul.addr %s151, 8
      %s153 = scalar_lea.vmem %s1, %s152
      // Predicated region
      $region25: #{avg_pool_block.3} parent=23 // pred_check
        %p154 = pneg %p70
      $region26: #{avg_pool_block.3} parent=23 // pred_check_branch
        %156 = sbr.rel (%p154) target = $region28
      $region27: #{avg_pool_block.3} parent=23 // pred_region
        %s157 = smul.u32 2, %s17
      $region28: #{avg_pool_block.3} parent=23 // pred_fallthru
        _
    $region24: #{avg_pool_block.3} parent=5 // pred_fallthru
      _
    %p158 = scmp.le.s32.totalorder 2, %s7
    // Predicated region
    $region29: #{avg_pool_block.3} parent=5 // pred_check
      %p159 = pneg %p158
    $region30: #{avg_pool_block.3} parent=5 // pred_check_branch
      %161 = sbr.rel (%p159) target = $region32
    $region31: #{avg_pool_block.3} parent=5 // pred_region
      %s162 = ssub.s32 %s7, 2
      // Predicated region
      $region33: #{avg_pool_block.3} parent=31 // pred_check
        %p163 = pneg %p76
      $region34: #{avg_pool_block.3} parent=31 // pred_check_branch
        %165 = sbr.rel (%p163) target = $region36
      $region35: #{avg_pool_block.3} parent=31 // pred_region
        %s166 = smul.u32 2, %s19
        %p167 = scmp.lt.s32.totalorder %s18, 1
        %s168 = scalar_select %p167, %s18, 1
        %p169 = scmp.lt.s32.totalorder %s166, 1
        %s170 = scalar_select %p169, %s166, 1
        %s171 = smul.addr %s168, 2
        %s172 = sadd.s32 %s170, %s171
        %s173 = smul.addr %s172, 8
        %s174 = scalar_lea.vmem %s1, %s173
      $region36: #{avg_pool_block.3} parent=31 // pred_fallthru
        _
    $region32: #{avg_pool_block.3} parent=5 // pred_fallthru
      _
  $region6: #{avg_pool_block.3} parent=0 // loop_footer
    %s11 = sadd.s32 1, %s7
  $region7: #{avg_pool_block.3} parent=0 // loop_footer_branch
    %6 = sbr.rel target = $region3
  $region8: #{avg_pool_block.3} parent=0 // loop_exit
    _

</llo_original>
